<compile_context>
chip_gen: v7x
topology: tpu7x:2x2x1
jax: 0.10.0
libtpu: 0.0.40
codegen_flags: <defaults>
</compile_context>

<pallas_src>
import functools
import math

import numpy as np

import jax
import jax.numpy as jnp
from jax.experimental import pallas as pl
from jax.experimental.pallas import tpu as pltpu


# ---------------------------------------------------------------------------
# Small helpers.
# ---------------------------------------------------------------------------
def _cdiv(a: int, b: int) -> int:
    return -(-a // b)


def _round_up(a: int, m: int) -> int:
    return _cdiv(a, m) * m


# ---------------------------------------------------------------------------
# Interpolation-weight construction (numpy: shapes are static under jit, so
# the weights are concrete and we can check bf16 exactness in Python).
# ---------------------------------------------------------------------------
def _interp_matrix_np(out_size: int, in_size: int, align_corners: bool) -> np.ndarray:
    """(out_size, in_size) bilinear weight matrix (PyTorch semantics)."""
    dst = np.arange(out_size, dtype=np.float64)
    if align_corners:
        if out_size == 1:
            src = np.zeros((1,), dtype=np.float64)
        else:
            src = dst * (in_size - 1) / (out_size - 1)
    else:
        scale = in_size / out_size
        src = np.maximum(scale * (dst + 0.5) - 0.5, 0.0)   # PyTorch clamps negatives
    i0 = np.minimum(np.floor(src).astype(np.int64), in_size - 1)
    i1 = np.minimum(i0 + 1, in_size - 1)
    lam1 = (src - i0).astype(np.float32)
    lam0 = np.float32(1.0) - lam1
    w = np.zeros((out_size, in_size), dtype=np.float32)
    rows = np.arange(out_size)
    w[rows, i0] += lam0
    w[rows, i1] += lam1          # i0 == i1 at edges -> entry sums to 1.0 (correct)
    return w


def _bf16_exact(w: np.ndarray) -> bool:
    """True iff every weight round-trips bf16 exactly (e.g. scale_factor=2)."""
    return bool(np.all(w.astype(jnp.bfloat16).astype(np.float32) == w))


# ---------------------------------------------------------------------------
# VMEM budgets & block-size selection.
# ---------------------------------------------------------------------------
_MAX_BLOCK_PLANES = 2048
_KRON_WEIGHT_MAX_BYTES = 4 * 2**20


@functools.lru_cache(maxsize=None)
def _vmem_budgets():
    """(vmem_limit_bytes, per-step block budget), generation-aware.

    ~3/4 of physical VMEM as the scoped limit and ~1/2 as the block budget:
    96/64 MiB on 128-MiB parts (v5e/v6e), 48/32 MiB on 64-MiB v7x.
    """
    try:
        vmem = int(pltpu.get_tpu_info().vmem_capacity_bytes)
    except Exception:                       # conservative (v7x-sized) fallback
        vmem = 64 * 2**20
    vmem = max(vmem, 32 * 2**20)
    return (vmem * 3) // 4, vmem // 2


def _pick_block_planes(nc, per_plane_bytes, resident_bytes, multiple, block_budget):
    """Planes per grid step: as large as the VMEM block budget allows, but with
    a grid length that is >= 2 and even so v7x's two TensorCores get balanced
    work under dimension_semantics=("parallel",)."""
    avail = max(block_budget - resident_bytes, per_plane_bytes * multiple)
    cap = max(multiple, (avail // per_plane_bytes) // multiple * multiple)
    cap = min(cap, _MAX_BLOCK_PLANES)
    steps = max(2, _cdiv(nc, cap))
    if steps % 2:
        steps += 1
    b = min(cap, max(multiple, _round_up(_cdiv(nc, steps), multiple)))
    return b


# ---------------------------------------------------------------------------
# Kernels.
# ---------------------------------------------------------------------------
def _upsample_kron_kernel(x_ref, w_ref, o_ref):
    # x_ref: (B, HW_in)   w_ref: (HW_in, HW_out)   o_ref: (B, HW_out)
    # Single lane-dense MXU matmul (out lanes are a large multiple of 128 for
    # typical decoder maps -> unmasked vector stores).  x is cast to the weight
    # (compute) dtype; accumulation is f32.
    x = x_ref[...].astype(w_ref.dtype)
    o_ref[...] = jnp.dot(
        x, w_ref[...], preferred_element_type=jnp.float32
    ).astype(o_ref.dtype)


def _upsample_separable_kernel(x_ref, wh_ref, wwt_ref, o_ref, tmp_ref):
    # x_ref:  (B, H_in,  W_in)     wh_ref:  (H_out, H_in)
    # wwt_ref:(W_in, W_out)        o_ref:   (B, H_out, W_out)
    # tmp_ref:(B*H_in, W_out) f32 scratch
    nblk, h_in, w_in = x_ref.shape
    cdt = wwt_ref.dtype

    # Stage 1 (W direction), batched across ALL planes in the block:
    # one MXU matmul with M = B*H_in instead of B tiny per-plane matmuls.
    x2d = x_ref[...].astype(cdt).reshape(nblk * h_in, w_in)
    tmp_ref[...] = jnp.dot(x2d, wwt_ref[...], preferred_element_type=jnp.float32)

    wh = wh_ref[...]                      # hoisted out of the loop

    # Stage 2 (H direction), per plane.
    # TODO(synk): could also be batched with an in-kernel relayout putting H_in
    #             on the contraction axis for a single (H_out, B*W_out) matmul.
    @pl.loop(0, nblk)
    def _(i):
        start = i * h_in
        if h_in % 8 == 0:
            start = pl.multiple_of(start, 8)
        t = tmp_ref[pl.ds(start, h_in), :].astype(cdt)
        o_ref[i] = jnp.dot(wh, t, preferred_element_type=jnp.float32).astype(o_ref.dtype)


# ---------------------------------------------------------------------------
# Wrapper (forward of the PyTorch `Upsample` module).
# ---------------------------------------------------------------------------
@functools.partial(
    jax.jit, static_argnames=("size", "scale_factor", "mode", "align_corners"))
def upsample(x: jnp.ndarray, size=None, scale_factor=None,
             mode: str = "bilinear", align_corners: bool = False) -> jnp.ndarray:
    """NCHW interpolation matching torch.nn.functional.interpolate (bilinear)."""
    if mode != "bilinear":
        # TODO(synk): nearest / bicubic modes are not implemented.
        raise NotImplementedError(f"mode={mode!r} not supported (only 'bilinear')")

    n, c, h_in, w_in = x.shape
    if size is not None:
        if isinstance(size, (tuple, list)):
            h_out, w_out = int(size[0]), int(size[1])
        else:
            h_out = w_out = int(size)
    else:
        if scale_factor is None:
            raise ValueError("either `size` or `scale_factor` must be given")
        if isinstance(scale_factor, (tuple, list)):
            sh, sw = scale_factor
        else:
            sh = sw = scale_factor
        h_out = int(math.floor(h_in * sh))
        w_out = int(math.floor(w_in * sw))

    nc = n * c
    hw_in = h_in * w_in
    hw_out = h_out * w_out
    x_elt = jnp.dtype(x.dtype).itemsize
    out_dtype = x.dtype

    # Static interpolation matrices.
    wh = _interp_matrix_np(h_out, h_in, align_corners)
    ww = _interp_matrix_np(w_out, w_in, align_corners)

    # Only build the (potentially large) Kronecker weight when it could be used.
    build_kron = (hw_in <= 256) and (hw_in * hw_out * 2 <= _KRON_WEIGHT_MAX_BYTES)
    w_kron = np.kron(wh, ww).astype(np.float32) if build_kron else None

    # MXU compute dtype: bf16 only when the weights are exactly representable
    # in bf16 (dyadic taps, e.g. scale_factor=2) -> ~4x matmul throughput and
    # half the weight VMEM/DMA at zero weight-rounding cost.  Otherwise f32.
    weights_bf16_exact = (
        _bf16_exact(wh) and _bf16_exact(ww)
        and (w_kron is None or _bf16_exact(w_kron)))
    compute_dtype = jnp.bfloat16 if weights_bf16_exact else jnp.float32
    w_elt = jnp.dtype(compute_dtype).itemsize

    vmem_limit, block_budget = _vmem_budgets()
    compiler_params = pltpu.CompilerParams(
        dimension_semantics=("parallel",),
        vmem_limit_bytes=int(vmem_limit),
    )

    # Kron path gate: small weight AND low arithmetic intensity (HW_in MACs per
    # output element) so the intrinsically HBM-bound op never goes MXU-bound,
    # conservatively across v5e/v6e/v7x.
    kron_bytes = hw_in * hw_out * w_elt
    hw_in_limit = 256 if compute_dtype == jnp.bfloat16 else 128
    use_kron = (w_kron is not None
                and kron_bytes <= _KRON_WEIGHT_MAX_BYTES
                and hw_in <= hw_in_limit)

    if use_kron:
        # ---- Lane-dense single-matmul path (small planes) -------------------
        w_kron_t = jnp.asarray(w_kron.T.astype(compute_dtype))       # (HW_in, HW_out)
        multiple = max(8, 32 // x_elt)        # dtype-aware sublane packing of B
        per_plane = 2 * (hw_in + hw_out) * x_elt                     # 2x-buffered io
        resident = 2 * kron_bytes                                    # weight buffers
        b = _pick_block_planes(nc, per_plane, resident, multiple, block_budget)
        if b * per_plane + resident > vmem_limit:
            # TODO(synk): spatial tiling of very large planes not implemented.
            raise NotImplementedError("plane too large for a single VMEM block")

        out_flat = pl.pallas_call(
            _upsample_kron_kernel,
            out_shape=jax.ShapeDtypeStruct((nc, hw_out), out_dtype),
            grid_spec=pltpu.PrefetchScalarGridSpec(
                num_scalar_prefetch=0,
                grid=(_cdiv(nc, b),),            # ragged last block handled by Pallas
                in_specs=[
                    pl.BlockSpec((b, hw_in), lambda i: (i, 0)),
                    pl.BlockSpec((hw_in, hw_out), lambda i: (0, 0)),  # resident weight
                ],
                out_specs=pl.BlockSpec((b, hw_out), lambda i: (i, 0)),
            ),
            compiler_params=compiler_params,
        )(x.reshape(nc, hw_in), w_kron_t)
        return out_flat.reshape(n, c, h_out, w_out)

    # ---- Separable two-matmul path (larger planes) ---------------------------
    wh_c = jnp.asarray(wh.astype(compute_dtype))        # (H_out, H_in)
    wwt_c = jnp.asarray(ww.T.astype(compute_dtype))     # (W_in, W_out)
    resident = 2 * (wh_c.size + wwt_c.size) * w_elt
    per_plane = 2 * (hw_in + hw_out) * x_elt + h_in * w_out * 4      # + f32 scratch
    b = _pick_block_planes(nc, per_plane, resident, 1, block_budget)
    if b * per_plane + resident > vmem_limit:
        # TODO(synk): spatial tiling of very large planes not implemented.
        raise NotImplementedError("plane too large for a single VMEM block")

    out_flat = pl.pallas_call(
        _upsample_separable_kernel,
        out_shape=jax.ShapeDtypeStruct((nc, h_out, w_out), out_dtype),
        grid_spec=pltpu.PrefetchScalarGridSpec(
            num_scalar_prefetch=0,
            grid=(_cdiv(nc, b),),                # ragged last block handled by Pallas
            in_specs=[
                pl.BlockSpec((b, h_in, w_in), lambda i: (i, 0, 0)),
                pl.BlockSpec((h_out, h_in), lambda i: (0, 0)),        # resident
                pl.BlockSpec((w_in, w_out), lambda i: (0, 0)),        # resident
            ],
            out_specs=pl.BlockSpec((b, h_out, w_out), lambda i: (i, 0, 0)),
            scratch_shapes=[pltpu.VMEM((b * h_in, w_out), jnp.float32)],
        ),
        compiler_params=compiler_params,
    )(x.reshape(nc, h_in, w_in), wh_c, wwt_c)
    return out_flat.reshape(n, c, h_out, w_out)


# ---------------------------------------------------------------------------
# Self-test.
# ---------------------------------------------------------------------------
if __name__ == "__main__":
    key = jax.random.PRNGKey(0)
    k1, k2 = jax.random.split(key)

    # Tolerance sized for the bf16-MXU path (input tile is rounded to bf16 with
    # exact weights and f32 accumulation); the f32 path is far tighter.
    TOL = 3e-2

    # 1) Decoder-style map 16x16 -> 32x32: lane-dense Kronecker path, bf16 MXU.
    x = jax.random.normal(k1, (2, 4, 16, 16), dtype=jnp.float32)
    out = jax.block_until_ready(upsample(x, scale_factor=2))
    assert out.shape == (2, 4, 32, 32), out.shape
    wh = _interp_matrix_np(32, 16, False)
    ww = _interp_matrix_np(32, 16, False)
    ref = np.einsum("oh,nchw,pw->ncop", wh, np.asarray(x, np.float32), ww)
    err = float(np.max(np.abs(np.asarray(out, np.float32) - ref)))
    assert err < TOL, err

    # 2) Larger plane 48x48 -> 96x96: batched separable path, bf16 MXU,
    #    nc=3 planes over an even grid with a ragged last block.
    x2 = jax.random.normal(k2, (1, 3, 48, 48), dtype=jnp.float32)
    out2 = jax.block_until_ready(upsample(x2, scale_factor=2))
    assert out2.shape == (1, 3, 96, 96), out2.shape
    wh2 = _interp_matrix_np(96, 48, False)
    ww2 = _interp_matrix_np(96, 48, False)
    ref2 = np.einsum("oh,nchw,pw->ncop", wh2, np.asarray(x2, np.float32), ww2)
    err2 = float(np.max(np.abs(np.asarray(out2, np.float32) - ref2)))
    assert err2 < TOL, err2

    # 3) Non-dyadic target size (size=(24, 24)): taps not bf16-exact, so the
    #    kernel stays in f32 (separable path).
    out3 = jax.block_until_ready(upsample(x, size=(24, 24)))
    assert out3.shape == (2, 4, 24, 24), out3.shape
    wh3 = _interp_matrix_np(24, 16, False)
    ww3 = _interp_matrix_np(24, 16, False)
    ref3 = np.einsum("oh,nchw,pw->ncop", wh3, np.asarray(x, np.float32), ww3)
    err3 = float(np.max(np.abs(np.asarray(out3, np.float32) - ref3)))
    assert err3 < TOL, err3

    print("KERNEL_OK")
</pallas_src>

<mosaic_0001>
module attributes {stable_mosaic.version = 11 : i64} {
  func.func @_upsample_kron_kernel(%arg0: i32, %arg1: memref<8x256xf32, #tpu.memory_space<vmem>>, %arg2: memref<256x1024xbf16, #tpu.memory_space<vmem>>, %arg3: memref<8x1024xf32, #tpu.memory_space<vmem>>) attributes {dimension_semantics = [#tpu.dimension_semantics<parallel>], iteration_bounds = array<i64: 1>, scalar_prefetch = 0 : i64, scratch_operands = 0 : i64, tpu.core_type = #tpu.core_type<tc>, window_params = [{transform_indices = @transform_0, window_bounds = array<i64: 8, 256>}, {pipeline_mode = #tpu.pipeline_mode<synchronous>, transform_indices = @transform_1, window_bounds = array<i64: 256, 1024>}, {transform_indices = @transform_2, window_bounds = array<i64: 8, 1024>}]} {
    %c0 = arith.constant 0 : index
    %c0_0 = arith.constant 0 : index
    %0 = vector.load %arg1[%c0, %c0_0] : memref<8x256xf32, #tpu.memory_space<vmem>>, vector<8x256xf32>
    %1 = arith.truncf %0 : vector<8x256xf32> to vector<8x256xbf16>
    %c0_1 = arith.constant 0 : index
    %c0_2 = arith.constant 0 : index
    %2 = vector.load %arg2[%c0_1, %c0_2] : memref<256x1024xbf16, #tpu.memory_space<vmem>>, vector<256x1024xbf16>
    %cst = arith.constant dense<0.000000e+00> : vector<8x1024xf32>
    %3 = tpu.matmul %1, %2, %cst {dimension_numbers = #tpu.dot_dimension_numbers<[1], [0], [0], [1], [0, 0, 1, 1], [], []>} : vector<8x256xbf16>, vector<256x1024xbf16>, vector<8x1024xf32> -> vector<8x1024xf32>
    %c0_3 = arith.constant 0 : index
    %c0_4 = arith.constant 0 : index
    %4 = vector.load %arg3[%c0_3, %c0_4] : memref<8x1024xf32, #tpu.memory_space<vmem>>, vector<8x1024xf32>
    tpu.vector_store %arg3[%c0_3, %c0_4], %3 {strides = array<i32>} : memref<8x1024xf32, #tpu.memory_space<vmem>>, vector<8x1024xf32>,
    return
  }
  func.func @transform_0(%arg0: i32) -> (i32, i32) {
    %c0_i32 = arith.constant 0 : i32
    %c0_i32_0 = arith.constant 0 : i32
    return %arg0, %c0_i32 : i32, i32
  }
  func.func @transform_1(%arg0: i32) -> (i32, i32) {
    %c0_i32 = arith.constant 0 : i32
    %c0_i32_0 = arith.constant 0 : i32
    %c0_i32_1 = arith.constant 0 : i32
    return %c0_i32, %c0_i32_0 : i32, i32
  }
  func.func @transform_2(%arg0: i32) -> (i32, i32) {
    %c0_i32 = arith.constant 0 : i32
    %c0_i32_0 = arith.constant 0 : i32
    return %arg0, %c0_i32 : i32, i32
  }
}

</mosaic_0001>

<llo_original>
// kernel: upsample.1
$region0: #{upsample.1}
  #allocation0 [shape = 'u32[]', space=smem, size = 0x4, offset = 0x4, fixed_abs, tag = 'smem constant byte address 0x4 - core index']
  #allocation1 [shape = 'u32[144,128]{1,0:T(1,128)}', space=vmem, size = 0x12000, scoped, tag = 'internal scratch']
  %s0 = inlined_call_operand.vmem [shape: f32[8,256], index: 0, kind: input, shape index: {}]
  %s1 = inlined_call_operand.vmem [shape: bf16[256,1024], index: 1, kind: input, shape index: {}]
  %s2 = inlined_call_operand.vmem [shape: f32[8,1024], index: 2, kind: output, shape index: {}]
  %s3 = sld [smem:[#allocation0]]
  $region18: #{upsample.1} parent=0
    _
  %s5 = ssub.s32 1, %s3
  %s6 = scalar_select 0, %s5, %s3
  // Predicated region
  $region2: #{upsample.1} parent=0 // pred_check
    _
  $region3: #{upsample.1} parent=0 // pred_check_branch
    %8 = sbr.rel (0) target = $region5
  $region4: #{upsample.1} parent=0 // pred_region
    _
  $region5: #{upsample.1} parent=0 // pred_fallthru
    _
  // Predicated region
  $region6: #{upsample.1} parent=0 // pred_check
    _
  $region7: #{upsample.1} parent=0 // pred_check_branch
    %10 = sbr.rel (0) target = $region9
  $region8: #{upsample.1} parent=0 // pred_region
    _
  $region9: #{upsample.1} parent=0 // pred_fallthru
    _
  %v11 = vld [vmem:[%s0] sm:$0xff]
  %v12 = vld [vmem:[%s0 + $0x8] sm:$0xff]
  %v13 = vpack.c.bf16 %v11, %v11
  %v14 = vpack.c.bf16 %v12, %v12
  %v15 = vld [vmem:[%s1] sm:$0xff]
  %v16 = vld [vmem:[%s1 + $0x8] sm:$0xff]
  %v17 = vld [vmem:[%s1 + $0x10] sm:$0xff]
  %v18 = vld [vmem:[%s1 + $0x18] sm:$0xff]
  %v19 = vld [vmem:[%s1 + $0x20] sm:$0xff]
  %v20 = vld [vmem:[%s1 + $0x28] sm:$0xff]
  %v21 = vld [vmem:[%s1 + $0x30] sm:$0xff]
  %v22 = vld [vmem:[%s1 + $0x38] sm:$0xff]
  %v23 = vld [vmem:[%s1 + $0x40] sm:$0xff]
  %v24 = vld [vmem:[%s1 + $0x48] sm:$0xff]
  %v25 = vld [vmem:[%s1 + $0x50] sm:$0xff]
  %v26 = vld [vmem:[%s1 + $0x58] sm:$0xff]
  %v27 = vld [vmem:[%s1 + $0x60] sm:$0xff]
  %v28 = vld [vmem:[%s1 + $0x68] sm:$0xff]
  %v29 = vld [vmem:[%s1 + $0x70] sm:$0xff]
  %v30 = vld [vmem:[%s1 + $0x78] sm:$0xff]
  %v31 = vld [vmem:[%s1 + $0x80] sm:$0xff]
  %v32 = vld [vmem:[%s1 + $0x88] sm:$0xff]
  %v33 = vld [vmem:[%s1 + $0x90] sm:$0xff]
  %v34 = vld [vmem:[%s1 + $0x98] sm:$0xff]
  %v35 = vld [vmem:[%s1 + $0xa0] sm:$0xff]
  %v36 = vld [vmem:[%s1 + $0xa8] sm:$0xff]
  %v37 = vld [vmem:[%s1 + $0xb0] sm:$0xff]
  %v38 = vld [vmem:[%s1 + $0xb8] sm:$0xff]
  %v39 = vld [vmem:[%s1 + $0xc0] sm:$0xff]
  %v40 = vld [vmem:[%s1 + $0xc8] sm:$0xff]
  %v41 = vld [vmem:[%s1 + $0xd0] sm:$0xff]
  %v42 = vld [vmem:[%s1 + $0xd8] sm:$0xff]
  %v43 = vld [vmem:[%s1 + $0xe0] sm:$0xff]
  %v44 = vld [vmem:[%s1 + $0xe8] sm:$0xff]
  %v45 = vld [vmem:[%s1 + $0xf0] sm:$0xff]
  %v46 = vld [vmem:[%s1 + $0xf8] sm:$0xff]
  %v47 = vld [vmem:[%s1 + $0x100] sm:$0xff]
  %v48 = vld [vmem:[%s1 + $0x108] sm:$0xff]
  %v49 = vld [vmem:[%s1 + $0x110] sm:$0xff]
  %v50 = vld [vmem:[%s1 + $0x118] sm:$0xff]
  %v51 = vld [vmem:[%s1 + $0x120] sm:$0xff]
  %v52 = vld [vmem:[%s1 + $0x128] sm:$0xff]
  %v53 = vld [vmem:[%s1 + $0x130] sm:$0xff]
  %v54 = vld [vmem:[%s1 + $0x138] sm:$0xff]
  %v55 = vld [vmem:[%s1 + $0x140] sm:$0xff]
  %v56 = vld [vmem:[%s1 + $0x148] sm:$0xff]
  %v57 = vld [vmem:[%s1 + $0x150] sm:$0xff]
  %v58 = vld [vmem:[%s1 + $0x158] sm:$0xff]
  %v59 = vld [vmem:[%s1 + $0x160] sm:$0xff]
  %v60 = vld [vmem:[%s1 + $0x168] sm:$0xff]
  %v61 = vld [vmem:[%s1 + $0x170] sm:$0xff]
  %v62 = vld [vmem:[%s1 + $0x178] sm:$0xff]
  %v63 = vld [vmem:[%s1 + $0x180] sm:$0xff]
  %v64 = vld [vmem:[%s1 + $0x188] sm:$0xff]
  %v65 = vld [vmem:[%s1 + $0x190] sm:$0xff]
  %v66 = vld [vmem:[%s1 + $0x198] sm:$0xff]
  %v67 = vld [vmem:[%s1 + $0x1a0] sm:$0xff]
  %v68 = vld [vmem:[%s1 + $0x1a8] sm:$0xff]
  %v69 = vld [vmem:[%s1 + $0x1b0] sm:$0xff]
  %v70 = vld [vmem:[%s1 + $0x1b8] sm:$0xff]
  %v71 = vld [vmem:[%s1 + $0x1c0] sm:$0xff]
  %v72 = vld [vmem:[%s1 + $0x1c8] sm:$0xff]
  %v73 = vld [vmem:[%s1 + $0x1d0] sm:$0xff]
  %v74 = vld [vmem:[%s1 + $0x1d8] sm:$0xff]
  %v75 = vld [vmem:[%s1 + $0x1e0] sm:$0xff]
  %v76 = vld [vmem:[%s1 + $0x1e8] sm:$0xff]
  %v77 = vld [vmem:[%s1 + $0x1f0] sm:$0xff]
  %v78 = vld [vmem:[%s1 + $0x1f8] sm:$0xff]
  %v79 = vld [vmem:[%s1 + $0x200] sm:$0xff]
  %v80 = vld [vmem:[%s1 + $0x208] sm:$0xff]
  %v81 = vld [vmem:[%s1 + $0x210] sm:$0xff]
  %v82 = vld [vmem:[%s1 + $0x218] sm:$0xff]
  %v83 = vld [vmem:[%s1 + $0x220] sm:$0xff]
  %v84 = vld [vmem:[%s1 + $0x228] sm:$0xff]
  %v85 = vld [vmem:[%s1 + $0x230] sm:$0xff]
  %v86 = vld [vmem:[%s1 + $0x238] sm:$0xff]
  %v87 = vld [vmem:[%s1 + $0x240] sm:$0xff]
  %v88 = vld [vmem:[%s1 + $0x248] sm:$0xff]
  %v89 = vld [vmem:[%s1 + $0x250] sm:$0xff]
  %v90 = vld [vmem:[%s1 + $0x258] sm:$0xff]
  %v91 = vld [vmem:[%s1 + $0x260] sm:$0xff]
  %v92 = vld [vmem:[%s1 + $0x268] sm:$0xff]
  %v93 = vld [vmem:[%s1 + $0x270] sm:$0xff]
  %v94 = vld [vmem:[%s1 + $0x278] sm:$0xff]
  %v95 = vld [vmem:[%s1 + $0x280] sm:$0xff]
  %v96 = vld [vmem:[%s1 + $0x288] sm:$0xff]
  %v97 = vld [vmem:[%s1 + $0x290] sm:$0xff]
  %v98 = vld [vmem:[%s1 + $0x298] sm:$0xff]
  %v99 = vld [vmem:[%s1 + $0x2a0] sm:$0xff]
  %v100 = vld [vmem:[%s1 + $0x2a8] sm:$0xff]
  %v101 = vld [vmem:[%s1 + $0x2b0] sm:$0xff]
  %v102 = vld [vmem:[%s1 + $0x2b8] sm:$0xff]
  %v103 = vld [vmem:[%s1 + $0x2c0] sm:$0xff]
  %v104 = vld [vmem:[%s1 + $0x2c8] sm:$0xff]
  %v105 = vld [vmem:[%s1 + $0x2d0] sm:$0xff]
  %v106 = vld [vmem:[%s1 + $0x2d8] sm:$0xff]
  %v107 = vld [vmem:[%s1 + $0x2e0] sm:$0xff]
  %v108 = vld [vmem:[%s1 + $0x2e8] sm:$0xff]
  %v109 = vld [vmem:[%s1 + $0x2f0] sm:$0xff]
  %v110 = vld [vmem:[%s1 + $0x2f8] sm:$0xff]
  %v111 = vld [vmem:[%s1 + $0x300] sm:$0xff]
  %v112 = vld [vmem:[%s1 + $0x308] sm:$0xff]
  %v113 = vld [vmem:[%s1 + $0x310] sm:$0xff]
  %v114 = vld [vmem:[%s1 + $0x318] sm:$0xff]
  %v115 = vld [vmem:[%s1 + $0x320] sm:$0xff]
  %v116 = vld [vmem:[%s1 + $0x328] sm:$0xff]
  %v117 = vld [vmem:[%s1 + $0x330] sm:$0xff]
  %v118 = vld [vmem:[%s1 + $0x338] sm:$0xff]
  %v119 = vld [vmem:[%s1 + $0x340] sm:$0xff]
  %v120 = vld [vmem:[%s1 + $0x348] sm:$0xff]
  %v121 = vld [vmem:[%s1 + $0x350] sm:$0xff]
  %v122 = vld [vmem:[%s1 + $0x358] sm:$0xff]
  %v123 = vld [vmem:[%s1 + $0x360] sm:$0xff]
  %v124 = vld [vmem:[%s1 + $0x368] sm:$0xff]
  %v125 = vld [vmem:[%s1 + $0x370] sm:$0xff]
  %v126 = vld [vmem:[%s1 + $0x378] sm:$0xff]
  %v127 = vld [vmem:[%s1 + $0x380] sm:$0xff]
  %v128 = vld [vmem:[%s1 + $0x388] sm:$0xff]
  %v129 = vld [vmem:[%s1 + $0x390] sm:$0xff]
  %v130 = vld [vmem:[%s1 + $0x398] sm:$0xff]
  %v131 = vld [vmem:[%s1 + $0x3a0] sm:$0xff]
  %v132 = vld [vmem:[%s1 + $0x3a8] sm:$0xff]
  %v133 = vld [vmem:[%s1 + $0x3b0] sm:$0xff]
  %v134 = vld [vmem:[%s1 + $0x3b8] sm:$0xff]
  %v135 = vld [vmem:[%s1 + $0x3c0] sm:$0xff]
  %v136 = vld [vmem:[%s1 + $0x3c8] sm:$0xff]
  %v137 = vld [vmem:[%s1 + $0x3d0] sm:$0xff]
  %v138 = vld [vmem:[%s1 + $0x3d8] sm:$0xff]
  %v139 = vld [vmem:[%s1 + $0x3e0] sm:$0xff]
  %v140 = vld [vmem:[%s1 + $0x3e8] sm:$0xff]
  %v141 = vld [vmem:[%s1 + $0x3f0] sm:$0xff]
  %v142 = vld [vmem:[%s1 + $0x3f8] sm:$0xff]
  %v271 = vunpack.c.l.b16 %v15
  %v272 = vunpack.c.h.b16 %v15
  %v273 = vunpack.c.l.b16 %v16
  %v274 = vunpack.c.h.b16 %v16
  %v275 = vunpack.c.l.b16 %v17
  %v276 = vunpack.c.h.b16 %v17
  %v277 = vunpack.c.l.b16 %v18
  %v278 = vunpack.c.h.b16 %v18
  %v279 = vunpack.c.l.b16 %v19
  %v280 = vunpack.c.h.b16 %v19
  %v281 = vunpack.c.l.b16 %v20
  %v282 = vunpack.c.h.b16 %v20
  %v283 = vunpack.c.l.b16 %v21
  %v284 = vunpack.c.h.b16 %v21
  %v285 = vunpack.c.l.b16 %v22
  %v286 = vunpack.c.h.b16 %v22
  %v287 = vunpack.c.l.b16 %v23
  %v288 = vunpack.c.h.b16 %v23
  %v289 = vunpack.c.l.b16 %v24
  %v290 = vunpack.c.h.b16 %v24
  %v291 = vunpack.c.l.b16 %v25
  %v292 = vunpack.c.h.b16 %v25
  %v293 = vunpack.c.l.b16 %v26
  %v294 = vunpack.c.h.b16 %v26
  %v295 = vunpack.c.l.b16 %v27
  %v296 = vunpack.c.h.b16 %v27
  %v297 = vunpack.c.l.b16 %v28
  %v298 = vunpack.c.h.b16 %v28
  %v299 = vunpack.c.l.b16 %v29
  %v300 = vunpack.c.h.b16 %v29
  %v301 = vunpack.c.l.b16 %v30
  %v302 = vunpack.c.h.b16 %v30
  %v303 = vunpack.c.l.b16 %v31
  %v304 = vunpack.c.h.b16 %v31
  %v305 = vunpack.c.l.b16 %v32
  %v306 = vunpack.c.h.b16 %v32
  %v307 = vunpack.c.l.b16 %v33
  %v308 = vunpack.c.h.b16 %v33
  %v309 = vunpack.c.l.b16 %v34
  %v310 = vunpack.c.h.b16 %v34
  %v311 = vunpack.c.l.b16 %v35
  %v312 = vunpack.c.h.b16 %v35
  %v313 = vunpack.c.l.b16 %v36
  %v314 = vunpack.c.h.b16 %v36
  %v315 = vunpack.c.l.b16 %v37
  %v316 = vunpack.c.h.b16 %v37
  %v317 = vunpack.c.l.b16 %v38
  %v318 = vunpack.c.h.b16 %v38
  %v319 = vunpack.c.l.b16 %v39
  %v320 = vunpack.c.h.b16 %v39
  %v321 = vunpack.c.l.b16 %v40
  %v322 = vunpack.c.h.b16 %v40
  %v323 = vunpack.c.l.b16 %v41
  %v324 = vunpack.c.h.b16 %v41
  %v325 = vunpack.c.l.b16 %v42
  %v326 = vunpack.c.h.b16 %v42
  %v327 = vunpack.c.l.b16 %v43
  %v328 = vunpack.c.h.b16 %v43
  %v329 = vunpack.c.l.b16 %v44
  %v330 = vunpack.c.h.b16 %v44
  %v331 = vunpack.c.l.b16 %v45
  %v332 = vunpack.c.h.b16 %v45
  %v333 = vunpack.c.l.b16 %v46
  %v334 = vunpack.c.h.b16 %v46
  %v335 = vunpack.c.l.b16 %v47
  %v336 = vunpack.c.h.b16 %v47
  %v337 = vunpack.c.l.b16 %v48
  %v338 = vunpack.c.h.b16 %v48
  %v339 = vunpack.c.l.b16 %v49
  %v340 = vunpack.c.h.b16 %v49
  %v341 = vunpack.c.l.b16 %v50
  %v342 = vunpack.c.h.b16 %v50
  %v343 = vunpack.c.l.b16 %v51
  %v344 = vunpack.c.h.b16 %v51
  %v345 = vunpack.c.l.b16 %v52
  %v346 = vunpack.c.h.b16 %v52
  %v347 = vunpack.c.l.b16 %v53
  %v348 = vunpack.c.h.b16 %v53
  %v349 = vunpack.c.l.b16 %v54
  %v350 = vunpack.c.h.b16 %v54
  %v351 = vunpack.c.l.b16 %v55
  %v352 = vunpack.c.h.b16 %v55
  %v353 = vunpack.c.l.b16 %v56
  %v354 = vunpack.c.h.b16 %v56
  %v355 = vunpack.c.l.b16 %v57
  %v356 = vunpack.c.h.b16 %v57
  %v357 = vunpack.c.l.b16 %v58
  %v358 = vunpack.c.h.b16 %v58
  %v359 = vunpack.c.l.b16 %v59
  %v360 = vunpack.c.h.b16 %v59
  %v361 = vunpack.c.l.b16 %v60
  %v362 = vunpack.c.h.b16 %v60
  %v363 = vunpack.c.l.b16 %v61
  %v364 = vunpack.c.h.b16 %v61
  %v365 = vunpack.c.l.b16 %v62
  %v366 = vunpack.c.h.b16 %v62
  %v367 = vunpack.c.l.b16 %v63
  %v368 = vunpack.c.h.b16 %v63
  %v369 = vunpack.c.l.b16 %v64
  %v370 = vunpack.c.h.b16 %v64
  %v371 = vunpack.c.l.b16 %v65
  %v372 = vunpack.c.h.b16 %v65
  %v373 = vunpack.c.l.b16 %v66
  %v374 = vunpack.c.h.b16 %v66
  %v375 = vunpack.c.l.b16 %v67
  %v376 = vunpack.c.h.b16 %v67
  %v377 = vunpack.c.l.b16 %v68
  %v378 = vunpack.c.h.b16 %v68
  %v379 = vunpack.c.l.b16 %v69
  %v380 = vunpack.c.h.b16 %v69
  %v381 = vunpack.c.l.b16 %v70
  %v382 = vunpack.c.h.b16 %v70
  %v383 = vunpack.c.l.b16 %v71
  %v384 = vunpack.c.h.b16 %v71
  %v385 = vunpack.c.l.b16 %v72
  %v386 = vunpack.c.h.b16 %v72
  %v387 = vunpack.c.l.b16 %v73
  %v388 = vunpack.c.h.b16 %v73
  %v389 = vunpack.c.l.b16 %v74
  %v390 = vunpack.c.h.b16 %v74
  %v391 = vunpack.c.l.b16 %v75
  %v392 = vunpack.c.h.b16 %v75
  %v393 = vunpack.c.l.b16 %v76
  %v394 = vunpack.c.h.b16 %v76
  %v395 = vunpack.c.l.b16 %v77
  %v396 = vunpack.c.h.b16 %v77
  %v397 = vunpack.c.l.b16 %v78
  %v398 = vunpack.c.h.b16 %v78
  %v399 = vunpack.c.l.b16 %v79
  %v400 = vunpack.c.h.b16 %v79
  %v401 = vunpack.c.l.b16 %v80
  %v402 = vunpack.c.h.b16 %v80
  %v403 = vunpack.c.l.b16 %v81
  %v404 = vunpack.c.h.b16 %v81
  %v405 = vunpack.c.l.b16 %v82
  %v406 = vunpack.c.h.b16 %v82
  %v407 = vunpack.c.l.b16 %v83
  %v408 = vunpack.c.h.b16 %v83
  %v409 = vunpack.c.l.b16 %v84
  %v410 = vunpack.c.h.b16 %v84
  %v411 = vunpack.c.l.b16 %v85
  %v412 = vunpack.c.h.b16 %v85
  %v413 = vunpack.c.l.b16 %v86
  %v414 = vunpack.c.h.b16 %v86
  %v415 = vunpack.c.l.b16 %v87
  %v416 = vunpack.c.h.b16 %v87
  %v417 = vunpack.c.l.b16 %v88
  %v418 = vunpack.c.h.b16 %v88
  %v419 = vunpack.c.l.b16 %v89
  %v420 = vunpack.c.h.b16 %v89
  %v421 = vunpack.c.l.b16 %v90
  %v422 = vunpack.c.h.b16 %v90
  %v423 = vunpack.c.l.b16 %v91
  %v424 = vunpack.c.h.b16 %v91
  %v425 = vunpack.c.l.b16 %v92
  %v426 = vunpack.c.h.b16 %v92
  %v427 = vunpack.c.l.b16 %v93
  %v428 = vunpack.c.h.b16 %v93
  %v429 = vunpack.c.l.b16 %v94
  %v430 = vunpack.c.h.b16 %v94
  %v431 = vunpack.c.l.b16 %v95
  %v432 = vunpack.c.h.b16 %v95
  %v433 = vunpack.c.l.b16 %v96
  %v434 = vunpack.c.h.b16 %v96
  %v435 = vunpack.c.l.b16 %v97
  %v436 = vunpack.c.h.b16 %v97
  %v437 = vunpack.c.l.b16 %v98
  %v438 = vunpack.c.h.b16 %v98
  %v439 = vunpack.c.l.b16 %v99
  %v440 = vunpack.c.h.b16 %v99
  %v441 = vunpack.c.l.b16 %v100
  %v442 = vunpack.c.h.b16 %v100
  %v443 = vunpack.c.l.b16 %v101
  %v444 = vunpack.c.h.b16 %v101
  %v445 = vunpack.c.l.b16 %v102
  %v446 = vunpack.c.h.b16 %v102
  %v447 = vunpack.c.l.b16 %v103
  %v448 = vunpack.c.h.b16 %v103
  %v449 = vunpack.c.l.b16 %v104
  %v450 = vunpack.c.h.b16 %v104
  %v451 = vunpack.c.l.b16 %v105
  %v452 = vunpack.c.h.b16 %v105
  %v453 = vunpack.c.l.b16 %v106
  %v454 = vunpack.c.h.b16 %v106
  %v455 = vunpack.c.l.b16 %v107
  %v456 = vunpack.c.h.b16 %v107
  %v457 = vunpack.c.l.b16 %v108
  %v458 = vunpack.c.h.b16 %v108
  %v459 = vunpack.c.l.b16 %v109
  %v460 = vunpack.c.h.b16 %v109
  %v461 = vunpack.c.l.b16 %v110
  %v462 = vunpack.c.h.b16 %v110
  %v463 = vunpack.c.l.b16 %v111
  %v464 = vunpack.c.h.b16 %v111
  %v465 = vunpack.c.l.b16 %v112
  %v466 = vunpack.c.h.b16 %v112
  %v467 = vunpack.c.l.b16 %v113
  %v468 = vunpack.c.h.b16 %v113
  %v469 = vunpack.c.l.b16 %v114
  %v470 = vunpack.c.h.b16 %v114
  %v471 = vunpack.c.l.b16 %v115
  %v472 = vunpack.c.h.b16 %v115
  %v473 = vunpack.c.l.b16 %v116
  %v474 = vunpack.c.h.b16 %v116
  %v475 = vunpack.c.l.b16 %v117
  %v476 = vunpack.c.h.b16 %v117
  %v477 = vunpack.c.l.b16 %v118
  %v478 = vunpack.c.h.b16 %v118
  %v479 = vunpack.c.l.b16 %v119
  %v480 = vunpack.c.h.b16 %v119
  %v481 = vunpack.c.l.b16 %v120
  %v482 = vunpack.c.h.b16 %v120
  %v483 = vunpack.c.l.b16 %v121
  %v484 = vunpack.c.h.b16 %v121
  %v485 = vunpack.c.l.b16 %v122
  %v486 = vunpack.c.h.b16 %v122
  %v487 = vunpack.c.l.b16 %v123
  %v488 = vunpack.c.h.b16 %v123
  %v489 = vunpack.c.l.b16 %v124
  %v490 = vunpack.c.h.b16 %v124
  %v491 = vunpack.c.l.b16 %v125
  %v492 = vunpack.c.h.b16 %v125
  %v493 = vunpack.c.l.b16 %v126
  %v494 = vunpack.c.h.b16 %v126
  %v495 = vunpack.c.l.b16 %v127
  %v496 = vunpack.c.h.b16 %v127
  %v497 = vunpack.c.l.b16 %v128
  %v498 = vunpack.c.h.b16 %v128
  %v499 = vunpack.c.l.b16 %v129
  %v500 = vunpack.c.h.b16 %v129
  %v501 = vunpack.c.l.b16 %v130
  %v502 = vunpack.c.h.b16 %v130
  %v503 = vunpack.c.l.b16 %v131
  %v504 = vunpack.c.h.b16 %v131
  %v505 = vunpack.c.l.b16 %v132
  %v506 = vunpack.c.h.b16 %v132
  %v507 = vunpack.c.l.b16 %v133
  %v508 = vunpack.c.h.b16 %v133
  %v509 = vunpack.c.l.b16 %v134
  %v510 = vunpack.c.h.b16 %v134
  %v511 = vunpack.c.l.b16 %v135
  %v512 = vunpack.c.h.b16 %v135
  %v513 = vunpack.c.l.b16 %v136
  %v514 = vunpack.c.h.b16 %v136
  %v515 = vunpack.c.l.b16 %v137
  %v516 = vunpack.c.h.b16 %v137
  %v517 = vunpack.c.l.b16 %v138
  %v518 = vunpack.c.h.b16 %v138
  %v519 = vunpack.c.l.b16 %v139
  %v520 = vunpack.c.h.b16 %v139
  %v521 = vunpack.c.l.b16 %v140
  %v522 = vunpack.c.h.b16 %v140
  %v523 = vunpack.c.l.b16 %v141
  %v524 = vunpack.c.h.b16 %v141
  %v525 = vunpack.c.l.b16 %v142
  %v526 = vunpack.c.h.b16 %v142
  %v527 = vpack.c.b16 %v279, %v271
  %v528 = vpack.c.b16 %v280, %v272
  %v529 = vpack.c.b16 %v281, %v273
  %v530 = vpack.c.b16 %v282, %v274
  %v531 = vpack.c.b16 %v283, %v275
  %v532 = vpack.c.b16 %v284, %v276
  %v533 = vpack.c.b16 %v285, %v277
  %v534 = vpack.c.b16 %v286, %v278
  %v535 = vpack.c.b16 %v295, %v287
  %v536 = vpack.c.b16 %v296, %v288
  %v537 = vpack.c.b16 %v297, %v289
  %v538 = vpack.c.b16 %v298, %v290
  %v539 = vpack.c.b16 %v299, %v291
  %v540 = vpack.c.b16 %v300, %v292
  %v541 = vpack.c.b16 %v301, %v293
  %v542 = vpack.c.b16 %v302, %v294
  %v543 = vpack.c.b16 %v311, %v303
  %v544 = vpack.c.b16 %v312, %v304
  %v545 = vpack.c.b16 %v313, %v305
  %v546 = vpack.c.b16 %v314, %v306
  %v547 = vpack.c.b16 %v315, %v307
  %v548 = vpack.c.b16 %v316, %v308
  %v549 = vpack.c.b16 %v317, %v309
  %v550 = vpack.c.b16 %v318, %v310
  %v551 = vpack.c.b16 %v327, %v319
  %v552 = vpack.c.b16 %v328, %v320
  %v553 = vpack.c.b16 %v329, %v321
  %v554 = vpack.c.b16 %v330, %v322
  %v555 = vpack.c.b16 %v331, %v323
  %v556 = vpack.c.b16 %v332, %v324
  %v557 = vpack.c.b16 %v333, %v325
  %v558 = vpack.c.b16 %v334, %v326
  %v559 = vpack.c.b16 %v343, %v335
  %v560 = vpack.c.b16 %v344, %v336
  %v561 = vpack.c.b16 %v345, %v337
  %v562 = vpack.c.b16 %v346, %v338
  %v563 = vpack.c.b16 %v347, %v339
  %v564 = vpack.c.b16 %v348, %v340
  %v565 = vpack.c.b16 %v349, %v341
  %v566 = vpack.c.b16 %v350, %v342
  %v567 = vpack.c.b16 %v359, %v351
  %v568 = vpack.c.b16 %v360, %v352
  %v569 = vpack.c.b16 %v361, %v353
  %v570 = vpack.c.b16 %v362, %v354
  %v571 = vpack.c.b16 %v363, %v355
  %v572 = vpack.c.b16 %v364, %v356
  %v573 = vpack.c.b16 %v365, %v357
  %v574 = vpack.c.b16 %v366, %v358
  %v575 = vpack.c.b16 %v375, %v367
  %v576 = vpack.c.b16 %v376, %v368
  %v577 = vpack.c.b16 %v377, %v369
  %v578 = vpack.c.b16 %v378, %v370
  %v579 = vpack.c.b16 %v379, %v371
  %v580 = vpack.c.b16 %v380, %v372
  %v581 = vpack.c.b16 %v381, %v373
  %v582 = vpack.c.b16 %v382, %v374
  %v583 = vpack.c.b16 %v391, %v383
  %v584 = vpack.c.b16 %v392, %v384
  %v585 = vpack.c.b16 %v393, %v385
  %v586 = vpack.c.b16 %v394, %v386
  %v587 = vpack.c.b16 %v395, %v387
  %v588 = vpack.c.b16 %v396, %v388
  %v589 = vpack.c.b16 %v397, %v389
  %v590 = vpack.c.b16 %v398, %v390
  %v591 = vpack.c.b16 %v407, %v399
  %v592 = vpack.c.b16 %v408, %v400
  %v593 = vpack.c.b16 %v409, %v401
  %v594 = vpack.c.b16 %v410, %v402
  %v595 = vpack.c.b16 %v411, %v403
  %v596 = vpack.c.b16 %v412, %v404
  %v597 = vpack.c.b16 %v413, %v405
  %v598 = vpack.c.b16 %v414, %v406
  %v599 = vpack.c.b16 %v423, %v415
  %v600 = vpack.c.b16 %v424, %v416
  %v601 = vpack.c.b16 %v425, %v417
  %v602 = vpack.c.b16 %v426, %v418
  %v603 = vpack.c.b16 %v427, %v419
  %v604 = vpack.c.b16 %v428, %v420
  %v605 = vpack.c.b16 %v429, %v421
  %v606 = vpack.c.b16 %v430, %v422
  %v607 = vpack.c.b16 %v439, %v431
  %v608 = vpack.c.b16 %v440, %v432
  %v609 = vpack.c.b16 %v441, %v433
  %v610 = vpack.c.b16 %v442, %v434
  %v611 = vpack.c.b16 %v443, %v435
  %v612 = vpack.c.b16 %v444, %v436
  %v613 = vpack.c.b16 %v445, %v437
  %v614 = vpack.c.b16 %v446, %v438
  %v615 = vpack.c.b16 %v455, %v447
  %v616 = vpack.c.b16 %v456, %v448
  %v617 = vpack.c.b16 %v457, %v449
  %v618 = vpack.c.b16 %v458, %v450
  %v619 = vpack.c.b16 %v459, %v451
  %v620 = vpack.c.b16 %v460, %v452
  %v621 = vpack.c.b16 %v461, %v453
  %v622 = vpack.c.b16 %v462, %v454
  %v623 = vpack.c.b16 %v471, %v463
  %v624 = vpack.c.b16 %v472, %v464
  %v625 = vpack.c.b16 %v473, %v465
  %v626 = vpack.c.b16 %v474, %v466
  %v627 = vpack.c.b16 %v475, %v467
  %v628 = vpack.c.b16 %v476, %v468
  %v629 = vpack.c.b16 %v477, %v469
  %v630 = vpack.c.b16 %v478, %v470
  %v631 = vpack.c.b16 %v487, %v479
  %v632 = vpack.c.b16 %v488, %v480
  %v633 = vpack.c.b16 %v489, %v481
  %v634 = vpack.c.b16 %v490, %v482
  %v635 = vpack.c.b16 %v491, %v483
  %v636 = vpack.c.b16 %v492, %v484
  %v637 = vpack.c.b16 %v493, %v485
  %v638 = vpack.c.b16 %v494, %v486
  %v639 = vpack.c.b16 %v503, %v495
  %v640 = vpack.c.b16 %v504, %v496
  %v641 = vpack.c.b16 %v505, %v497
  %v642 = vpack.c.b16 %v506, %v498
  %v643 = vpack.c.b16 %v507, %v499
  %v644 = vpack.c.b16 %v508, %v500
  %v645 = vpack.c.b16 %v509, %v501
  %v646 = vpack.c.b16 %v510, %v502
  %v647 = vpack.c.b16 %v519, %v511
  %v648 = vpack.c.b16 %v520, %v512
  %v649 = vpack.c.b16 %v521, %v513
  %v650 = vpack.c.b16 %v522, %v514
  %v651 = vpack.c.b16 %v523, %v515
  %v652 = vpack.c.b16 %v524, %v516
  %v653 = vpack.c.b16 %v525, %v517
  %v654 = vpack.c.b16 %v526, %v518
  %783 = vmatprep.subr.bf16.mxu0 %v528
  %784 = vmatpush1.bf16.msra.mxu0 %v527
  %785 = vmatprep.subr.bf16.mxu0 %v536
  %786 = vmatpush1.bf16.msra.mxu0 %v535
  %787 = vmatprep.subr.bf16.mxu0 %v544
  %788 = vmatpush1.bf16.msra.mxu0 %v543
  %789 = vmatprep.subr.bf16.mxu0 %v552
  %790 = vmatpush1.bf16.msra.mxu0 %v551
  %791 = vmatprep.subr.bf16.mxu0 %v560
  %792 = vmatpush1.bf16.msra.mxu0 %v559
  %793 = vmatprep.subr.bf16.mxu0 %v568
  %794 = vmatpush1.bf16.msra.mxu0 %v567
  %795 = vmatprep.subr.bf16.mxu0 %v576
  %796 = vmatpush1.bf16.msra.mxu0 %v575
  %797 = vmatprep.subr.bf16.mxu0 %v584
  %798 = vmatpush1.bf16.msra.mxu0 %v583
  %799 = vmatprep.subr.bf16.mxu0 %v592
  %800 = vmatpush1.bf16.msra.mxu0 %v591
  %801 = vmatprep.subr.bf16.mxu0 %v600
  %802 = vmatpush1.bf16.msra.mxu0 %v599
  %803 = vmatprep.subr.bf16.mxu0 %v608
  %804 = vmatpush1.bf16.msra.mxu0 %v607
  %805 = vmatprep.subr.bf16.mxu0 %v616
  %806 = vmatpush1.bf16.msra.mxu0 %v615
  %807 = vmatprep.subr.bf16.mxu0 %v624
  %808 = vmatpush1.bf16.msra.mxu0 %v623
  %809 = vmatprep.subr.bf16.mxu0 %v632
  %810 = vmatpush1.bf16.msra.mxu0 %v631
  %811 = vmatprep.subr.bf16.mxu0 %v640
  %812 = vmatpush1.bf16.msra.mxu0 %v639
  %813 = vmatprep.subr.bf16.mxu0 %v648
  %814 = vmatpush1.bf16.msra.mxu0 %v647
  %815 = vmatprep.mubr.bf16.mxu0 %v14
  %816 = vmatmul.mubr.bf16.gmra.mrb[0].mxu0 %v13
  %v817 = vpop.f32.mrb[0].mxu0
  %v818 = vadd.f32 0.0, %v817
  %v819 = vpop.f32.mrb[0].mxu0
  %v820 = vadd.f32 0.0, %v819
  %v821 = vpop.f32.mrb[0].mxu0
  %v822 = vpop.f32.mrb[0].mxu0
  %823 = vdwg.mxu0
  %824 = vmatprep.subr.bf16.mxu0 %v530
  %825 = vmatpush1.bf16.msra.mxu0 %v529
  %826 = vmatprep.subr.bf16.mxu0 %v538
  %827 = vmatpush1.bf16.msra.mxu0 %v537
  %828 = vmatprep.subr.bf16.mxu0 %v546
  %829 = vmatpush1.bf16.msra.mxu0 %v545
  %830 = vmatprep.subr.bf16.mxu0 %v554
  %831 = vmatpush1.bf16.msra.mxu0 %v553
  %832 = vmatprep.subr.bf16.mxu0 %v562
  %833 = vmatpush1.bf16.msra.mxu0 %v561
  %834 = vmatprep.subr.bf16.mxu0 %v570
  %835 = vmatpush1.bf16.msra.mxu0 %v569
  %836 = vmatprep.subr.bf16.mxu0 %v578
  %837 = vmatpush1.bf16.msra.mxu0 %v577
  %838 = vmatprep.subr.bf16.mxu0 %v586
  %839 = vmatpush1.bf16.msra.mxu0 %v585
  %840 = vmatprep.subr.bf16.mxu0 %v594
  %841 = vmatpush1.bf16.msra.mxu0 %v593
  %842 = vmatprep.subr.bf16.mxu0 %v602
  %843 = vmatpush1.bf16.msra.mxu0 %v601
  %844 = vmatprep.subr.bf16.mxu0 %v610
  %845 = vmatpush1.bf16.msra.mxu0 %v609
  %846 = vmatprep.subr.bf16.mxu0 %v618
  %847 = vmatpush1.bf16.msra.mxu0 %v617
  %848 = vmatprep.subr.bf16.mxu0 %v626
  %849 = vmatpush1.bf16.msra.mxu0 %v625
  %850 = vmatprep.subr.bf16.mxu0 %v634
  %851 = vmatpush1.bf16.msra.mxu0 %v633
  %852 = vmatprep.subr.bf16.mxu0 %v642
  %853 = vmatpush1.bf16.msra.mxu0 %v641
  %854 = vmatprep.subr.bf16.mxu0 %v650
  %855 = vmatpush1.bf16.msra.mxu0 %v649
  %856 = vmatprep.mubr.bf16.mxu0 %v14
  %857 = vmatmul.mubr.bf16.gmra.mrb[0].mxu0 %v13
  %v858 = vpop.f32.mrb[0].mxu0
  %v859 = vadd.f32 0.0, %v858
  %v860 = vpop.f32.mrb[0].mxu0
  %v861 = vadd.f32 0.0, %v860
  %v862 = vpop.f32.mrb[0].mxu0
  %v863 = vpop.f32.mrb[0].mxu0
  %864 = vdwg.mxu0
  %865 = vmatprep.subr.bf16.mxu0 %v532
  %866 = vmatpush1.bf16.msra.mxu0 %v531
  %867 = vmatprep.subr.bf16.mxu0 %v540
  %868 = vmatpush1.bf16.msra.mxu0 %v539
  %869 = vmatprep.subr.bf16.mxu0 %v548
  %870 = vmatpush1.bf16.msra.mxu0 %v547
  %871 = vmatprep.subr.bf16.mxu0 %v556
  %872 = vmatpush1.bf16.msra.mxu0 %v555
  %873 = vmatprep.subr.bf16.mxu0 %v564
  %874 = vmatpush1.bf16.msra.mxu0 %v563
  %875 = vmatprep.subr.bf16.mxu0 %v572
  %876 = vmatpush1.bf16.msra.mxu0 %v571
  %877 = vmatprep.subr.bf16.mxu0 %v580
  %878 = vmatpush1.bf16.msra.mxu0 %v579
  %879 = vmatprep.subr.bf16.mxu0 %v588
  %880 = vmatpush1.bf16.msra.mxu0 %v587
  %881 = vmatprep.subr.bf16.mxu0 %v596
  %882 = vmatpush1.bf16.msra.mxu0 %v595
  %883 = vmatprep.subr.bf16.mxu0 %v604
  %884 = vmatpush1.bf16.msra.mxu0 %v603
  %885 = vmatprep.subr.bf16.mxu0 %v612
  %886 = vmatpush1.bf16.msra.mxu0 %v611
  %887 = vmatprep.subr.bf16.mxu0 %v620
  %888 = vmatpush1.bf16.msra.mxu0 %v619
  %889 = vmatprep.subr.bf16.mxu0 %v628
  %890 = vmatpush1.bf16.msra.mxu0 %v627
  %891 = vmatprep.subr.bf16.mxu0 %v636
  %892 = vmatpush1.bf16.msra.mxu0 %v635
  %893 = vmatprep.subr.bf16.mxu0 %v644
  %894 = vmatpush1.bf16.msra.mxu0 %v643
  %895 = vmatprep.subr.bf16.mxu0 %v652
  %896 = vmatpush1.bf16.msra.mxu0 %v651
  %897 = vmatprep.mubr.bf16.mxu0 %v14
  %898 = vmatmul.mubr.bf16.gmra.mrb[0].mxu0 %v13
  %v899 = vpop.f32.mrb[0].mxu0
  %v900 = vadd.f32 0.0, %v899
  %v901 = vpop.f32.mrb[0].mxu0
  %v902 = vadd.f32 0.0, %v901
  %v903 = vpop.f32.mrb[0].mxu0
  %v904 = vpop.f32.mrb[0].mxu0
  %905 = vdwg.mxu0
  %906 = vmatprep.subr.bf16.mxu0 %v534
  %907 = vmatpush1.bf16.msra.mxu0 %v533
  %908 = vmatprep.subr.bf16.mxu0 %v542
  %909 = vmatpush1.bf16.msra.mxu0 %v541
  %910 = vmatprep.subr.bf16.mxu0 %v550
  %911 = vmatpush1.bf16.msra.mxu0 %v549
  %912 = vmatprep.subr.bf16.mxu0 %v558
  %913 = vmatpush1.bf16.msra.mxu0 %v557
  %914 = vmatprep.subr.bf16.mxu0 %v566
  %915 = vmatpush1.bf16.msra.mxu0 %v565
  %916 = vmatprep.subr.bf16.mxu0 %v574
  %917 = vmatpush1.bf16.msra.mxu0 %v573
  %918 = vmatprep.subr.bf16.mxu0 %v582
  %919 = vmatpush1.bf16.msra.mxu0 %v581
  %920 = vmatprep.subr.bf16.mxu0 %v590
  %921 = vmatpush1.bf16.msra.mxu0 %v589
  %922 = vmatprep.subr.bf16.mxu0 %v598
  %923 = vmatpush1.bf16.msra.mxu0 %v597
  %924 = vmatprep.subr.bf16.mxu0 %v606
  %925 = vmatpush1.bf16.msra.mxu0 %v605
  %926 = vmatprep.subr.bf16.mxu0 %v614
  %927 = vmatpush1.bf16.msra.mxu0 %v613
  %928 = vmatprep.subr.bf16.mxu0 %v622
  %929 = vmatpush1.bf16.msra.mxu0 %v621
  %930 = vmatprep.subr.bf16.mxu0 %v630
  %931 = vmatpush1.bf16.msra.mxu0 %v629
  %932 = vmatprep.subr.bf16.mxu0 %v638
  %933 = vmatpush1.bf16.msra.mxu0 %v637
  %934 = vmatprep.subr.bf16.mxu0 %v646
  %935 = vmatpush1.bf16.msra.mxu0 %v645
  %936 = vmatprep.subr.bf16.mxu0 %v654
  %937 = vmatpush1.bf16.msra.mxu0 %v653
  %938 = vmatprep.mubr.bf16.mxu0 %v14
  %939 = vmatmul.mubr.bf16.gmra.mrb[0].mxu0 %v13
  %v940 = vpop.f32.mrb[0].mxu0
  %v941 = vadd.f32 0.0, %v940
  %v942 = vpop.f32.mrb[0].mxu0
  %v943 = vadd.f32 0.0, %v942
  %v944 = vpop.f32.mrb[0].mxu0
  %v945 = vpop.f32.mrb[0].mxu0
  %946 = vdwg.mxu0
  %947 = vst [vmem:[%s2] sm:$0xff] %v818
  %948 = vst [vmem:[%s2 + $0x8] sm:$0xff] %v820
  %949 = vst [vmem:[%s2 + $0x10] sm:$0xff] %v859
  %950 = vst [vmem:[%s2 + $0x18] sm:$0xff] %v861
  %951 = vst [vmem:[%s2 + $0x20] sm:$0xff] %v900
  %952 = vst [vmem:[%s2 + $0x28] sm:$0xff] %v902
  %953 = vst [vmem:[%s2 + $0x30] sm:$0xff] %v941
  %954 = vst [vmem:[%s2 + $0x38] sm:$0xff] %v943
  // Predicated region
  $region10: #{upsample.1} parent=0 // pred_check
    _
  $region11: #{upsample.1} parent=0 // pred_check_branch
    %956 = sbr.rel (0) target = $region13
  $region12: #{upsample.1} parent=0 // pred_region
    _
  $region13: #{upsample.1} parent=0 // pred_fallthru
    _
  // Predicated region
  $region14: #{upsample.1} parent=0 // pred_check
    _
  $region15: #{upsample.1} parent=0 // pred_check_branch
    %958 = sbr.rel (0) target = $region17
  $region16: #{upsample.1} parent=0 // pred_region
    _
  $region17: #{upsample.1} parent=0 // pred_fallthru
    _

</llo_original>
